<compile_context>
chip_gen: v7x
topology: tpu7x:2x2x1
jax: 0.10.0
libtpu: 0.0.40
codegen_flags: <defaults>
</compile_context>

<pallas_src>
import math

import jax
import jax.numpy as jnp
from jax import lax
from jax.experimental import pallas as pl
from jax.experimental.pallas import tpu as pltpu


def _mha_kernel(q_ref, k_ref, v_ref, bias_ref,
                wq_ref, bq_ref, wk_ref, bk_ref, wv_ref, bv_ref,
                wp_ref, bp_ref, o_ref, acc_ref):
    """One (batch, query-tile, head) grid step."""
    h = pl.program_id(2)

    @pl.when(h == 0)
    def _init():
        acc_ref[...] = jnp.zeros_like(acc_ref)

    cdt = q_ref.dtype            # MXU operand dtype (f32, or bf16 if requested)

    q = q_ref[0]                 # (tS, E)
    k = k_ref[0]                 # (T,  E)
    v = v_ref[0]                 # (T,  E)

    # Per-head input projections (1/scale is pre-folded into Wq/bq by the wrapper).
    Qh = (jnp.dot(q, wq_ref[0], preferred_element_type=jnp.float32)
          + bq_ref[0]).astype(cdt)                                    # (tS, Dh)
    Kh = (jnp.dot(k, wk_ref[0], preferred_element_type=jnp.float32)
          + bk_ref[0]).astype(cdt)                                    # (T, Dh)
    Vh = (jnp.dot(v, wv_ref[0], preferred_element_type=jnp.float32)
          + bv_ref[0]).astype(cdt)                                    # (T, Dh)

    # Q_h @ K_h^T without an explicit transpose (contract last dims of both),
    # plus the precomputed additive mask bias.
    scores = lax.dot_general(
        Qh, Kh, (((1,), (1,)), ((), ())),
        preferred_element_type=jnp.float32) + bias_ref[...]           # (tS, T)

    # Numerically stable softmax in f32; reciprocal on the EUP slot.
    m = jnp.max(scores, axis=-1, keepdims=True)
    p = jnp.exp(scores - m)
    denom = jnp.sum(p, axis=-1, keepdims=True)
    attn = (p * pl.reciprocal(denom, approx=True)).astype(cdt)        # (tS, T)

    ctx = jnp.dot(attn, Vh, preferred_element_type=jnp.float32).astype(cdt)  # (tS, Dh)

    # Accumulate this head's slice of the output projection.
    acc_ref[...] += jnp.dot(ctx, wp_ref[0], preferred_element_type=jnp.float32)

    @pl.when(h == pl.num_programs(2) - 1)
    def _finalize():
        o_ref[0] = (acc_ref[...] + bp_ref[...]).astype(o_ref.dtype)


def _choose_block_s(S):
    # Tile the query axis when it is long and 128-aligned; otherwise one block.
    if S > 128 and S % 128 == 0:
        return 128
    return S


def multi_head_attention(query, key, value, attn_mask, params, num_heads,
                         *, compute_dtype=None, block_s=None):
    """query: (N, S, E); key/value: (N, T, E); attn_mask: (S, T) (0 = masked)."""
    N, S, E = query.shape
    _, T, _ = key.shape
    H = num_heads
    assert E % H == 0
    Dh = E // H
    inv_scale = 1.0 / math.sqrt(E / H)

    out_dtype = query.dtype
    cdt = out_dtype if compute_dtype is None else compute_dtype

    tS = _choose_block_s(S) if block_s is None else block_s
    assert S % tS == 0

    # Head-major weight layout so per-head slicing happens at the BlockSpec /
    # DMA level, not with in-kernel lane slices.  PyTorch weights are
    # (out_features, in_features); we compute x @ W.T, so transpose first.
    wq_h = (params["wq"].T * inv_scale).reshape(E, H, Dh).transpose(1, 0, 2).astype(cdt)  # (H, E, Dh)
    wk_h = params["wk"].T.reshape(E, H, Dh).transpose(1, 0, 2).astype(cdt)                # (H, E, Dh)
    wv_h = params["wv"].T.reshape(E, H, Dh).transpose(1, 0, 2).astype(cdt)                # (H, E, Dh)
    wp_h = params["wp"].T.reshape(H, Dh, E).astype(cdt)                                   # (H, Dh, E)
    bq_h = (params["bq"] * inv_scale).reshape(H, 1, Dh).astype(jnp.float32)
    bk_h = params["bk"].reshape(H, 1, Dh).astype(jnp.float32)
    bv_h = params["bv"].reshape(H, 1, Dh).astype(jnp.float32)
    bp = params["bp"].reshape(1, E).astype(jnp.float32)

    # Additive mask bias computed once (hoisted out of all per-head work);
    # finite -1e30 avoids the -inf -> NaN hazard for fully masked rows.
    if attn_mask is None:
        mask_bias = jnp.zeros((S, T), jnp.float32)
    else:
        mask_bias = jnp.where(attn_mask == 0, -1e30, 0.0).astype(jnp.float32)

    q_in = query.astype(cdt)
    k_in = key.astype(cdt)
    v_in = value.astype(cdt)

    grid = (N, S // tS, H)

    return pl.pallas_call(
        _mha_kernel,
        out_shape=jax.ShapeDtypeStruct((N, S, E), out_dtype),
        grid_spec=pltpu.PrefetchScalarGridSpec(
            num_scalar_prefetch=0,
            grid=grid,
            in_specs=[
                pl.BlockSpec((1, tS, E), lambda n, si, h: (n, si, 0)),   # query
                pl.BlockSpec((1, T, E), lambda n, si, h: (n, 0, 0)),     # key
                pl.BlockSpec((1, T, E), lambda n, si, h: (n, 0, 0)),     # value
                pl.BlockSpec((tS, T), lambda n, si, h: (si, 0)),         # mask bias
                pl.BlockSpec((1, E, Dh), lambda n, si, h: (h, 0, 0)),    # Wq (head h)
                pl.BlockSpec((1, 1, Dh), lambda n, si, h: (h, 0, 0)),    # bq (head h)
                pl.BlockSpec((1, E, Dh), lambda n, si, h: (h, 0, 0)),    # Wk (head h)
                pl.BlockSpec((1, 1, Dh), lambda n, si, h: (h, 0, 0)),    # bk (head h)
                pl.BlockSpec((1, E, Dh), lambda n, si, h: (h, 0, 0)),    # Wv (head h)
                pl.BlockSpec((1, 1, Dh), lambda n, si, h: (h, 0, 0)),    # bv (head h)
                pl.BlockSpec((1, Dh, E), lambda n, si, h: (h, 0, 0)),    # Wproj (head h)
                pl.BlockSpec((1, E), lambda n, si, h: (0, 0)),           # bproj
            ],
            out_specs=pl.BlockSpec((1, tS, E), lambda n, si, h: (n, si, 0)),
            scratch_shapes=[pltpu.VMEM((tS, E), jnp.float32)],
        ),
        compiler_params=pltpu.CompilerParams(
            dimension_semantics=("parallel", "parallel", "arbitrary")),
    )(q_in, k_in, v_in, mask_bias,
      wq_h, bq_h, wk_h, bk_h, wv_h, bv_h, wp_h, bp)


def _reference(query, key, value, attn_mask, params, num_heads):
    """Pure-JAX reference mirroring the PyTorch forward (eval-mode dropout)."""
    N, S, E = query.shape
    _, T, _ = key.shape
    H = num_heads
    Dh = E // H
    scale = math.sqrt(E / H)

    def lin(x, w, b):
        return x @ w.T + b

    Q = lin(query, params["wq"], params["bq"]).reshape(N, S, H, Dh).transpose(0, 2, 1, 3)
    K = lin(key, params["wk"], params["bk"]).reshape(N, T, H, Dh).transpose(0, 2, 1, 3)
    V = lin(value, params["wv"], params["bv"]).reshape(N, T, H, Dh).transpose(0, 2, 1, 3)

    scores = jnp.einsum("nhsd,nhtd->nhst", Q, K) / scale
    scores = jnp.where(attn_mask[None, None] == 0, -jnp.inf, scores)
    attn = jax.nn.softmax(scores, axis=-1)
    ctx = jnp.einsum("nhst,nhtd->nhsd", attn, V)
    ctx = ctx.transpose(0, 2, 1, 3).reshape(N, S, E)
    return lin(ctx, params["wp"], params["bp"])


if __name__ == "__main__":
    N, S, T, E, H = 2, 8, 8, 32, 2

    key0 = jax.random.PRNGKey(0)
    keys = jax.random.split(key0, 16)

    # Deterministic parameter init (PyTorch nn.Linear-style uniform bounds).
    bound = 1.0 / math.sqrt(E)
    u = lambda k, shape: jax.random.uniform(k, shape, jnp.float32, -bound, bound)
    params = {
        "wq": u(keys[0], (E, E)), "bq": u(keys[1], (E,)),
        "wk": u(keys[2], (E, E)), "bk": u(keys[3], (E,)),
        "wv": u(keys[4], (E, E)), "bv": u(keys[5], (E,)),
        "wp": u(keys[6], (E, E)), "bp": u(keys[7], (E,)),
    }

    query = jax.random.normal(keys[8], (N, S, E), jnp.float32)
    key_in = jax.random.normal(keys[9], (N, T, E), jnp.float32)
    value = jax.random.normal(keys[10], (N, T, E), jnp.float32)

    # Causal mask (S, T): mask[i, j] == 0 -> masked out.
    attn_mask = (jnp.tril(jnp.ones((S, T), jnp.float32)) > 0).astype(jnp.int32)

    out = multi_head_attention(query, key_in, value, attn_mask, params, H)
    out = jax.block_until_ready(out)

    ref = _reference(query, key_in, value, attn_mask, params, H)
    assert out.shape == (N, S, E)
    # Tolerance loosened slightly vs v1 for the approximate (EUP) softmax reciprocal.
    max_err = jnp.max(jnp.abs(out - ref))
    assert jnp.allclose(out, ref, atol=1e-2, rtol=1e-2), f"max abs err {max_err}"

    print("KERNEL_OK")
</pallas_src>

<mosaic_0001>
module attributes {stable_mosaic.version = 11 : i64} {
  func.func @_mha_kernel(%arg0: i32, %arg1: i32, %arg2: i32, %arg3: memref<1x8x32xf32, #tpu.memory_space<vmem>>, %arg4: memref<1x8x32xf32, #tpu.memory_space<vmem>>, %arg5: memref<1x8x32xf32, #tpu.memory_space<vmem>>, %arg6: memref<8x8xf32, #tpu.memory_space<vmem>>, %arg7: memref<1x32x16xf32, #tpu.memory_space<vmem>>, %arg8: memref<1x1x16xf32, #tpu.memory_space<vmem>>, %arg9: memref<1x32x16xf32, #tpu.memory_space<vmem>>, %arg10: memref<1x1x16xf32, #tpu.memory_space<vmem>>, %arg11: memref<1x32x16xf32, #tpu.memory_space<vmem>>, %arg12: memref<1x1x16xf32, #tpu.memory_space<vmem>>, %arg13: memref<1x16x32xf32, #tpu.memory_space<vmem>>, %arg14: memref<1x32xf32, #tpu.memory_space<vmem>>, %arg15: memref<1x8x32xf32, #tpu.memory_space<vmem>>, %arg16: memref<8x32xf32, #tpu.memory_space<vmem>>) attributes {dimension_semantics = [#tpu.dimension_semantics<parallel>, #tpu.dimension_semantics<parallel>, #tpu.dimension_semantics<arbitrary>], iteration_bounds = array<i64: 2, 1, 2>, scalar_prefetch = 0 : i64, scratch_operands = 1 : i64, tpu.core_type = #tpu.core_type<tc>, window_params = [{transform_indices = @transform_0, window_bounds = array<i64: 1, 8, 32>}, {transform_indices = @transform_1, window_bounds = array<i64: 1, 8, 32>}, {transform_indices = @transform_2, window_bounds = array<i64: 1, 8, 32>}, {transform_indices = @transform_3, window_bounds = array<i64: 8, 8>}, {transform_indices = @transform_4, window_bounds = array<i64: 1, 32, 16>}, {transform_indices = @transform_5, window_bounds = array<i64: 1, 1, 16>}, {transform_indices = @transform_6, window_bounds = array<i64: 1, 32, 16>}, {transform_indices = @transform_7, window_bounds = array<i64: 1, 1, 16>}, {transform_indices = @transform_8, window_bounds = array<i64: 1, 32, 16>}, {transform_indices = @transform_9, window_bounds = array<i64: 1, 1, 16>}, {transform_indices = @transform_10, window_bounds = array<i64: 1, 16, 32>}, {pipeline_mode = #tpu.pipeline_mode<synchronous>, transform_indices = @transform_11, window_bounds = array<i64: 1, 32>}, {transform_indices = @transform_12, window_bounds = array<i64: 1, 8, 32>}]} {
    %c0_i32 = arith.constant 0 : i32
    %0 = arith.cmpi eq, %arg2, %c0_i32 : i32
    %1 = arith.extui %0 : i1 to i32
    %c0_i32_0 = arith.constant 0 : i32
    %2 = arith.cmpi ne, %1, %c0_i32_0 : i32
    scf.if %2 {
      %cst_44 = arith.constant 0.000000e+00 : f32
      %53 = vector.broadcast %cst_44 : f32 to vector<8x32xf32>
      %c0_45 = arith.constant 0 : index
      %c0_46 = arith.constant 0 : index
      %54 = vector.load %arg16[%c0_45, %c0_46] : memref<8x32xf32, #tpu.memory_space<vmem>>, vector<8x32xf32>
      tpu.vector_store %arg16[%c0_45, %c0_46], %53 {strides = array<i32>} : memref<8x32xf32, #tpu.memory_space<vmem>>, vector<8x32xf32>,
    } else {
    }
    %c0 = arith.constant 0 : index
    %c0_1 = arith.constant 0 : index
    %c0_2 = arith.constant 0 : index
    %3 = vector.load %arg3[%c0, %c0_1, %c0_2] : memref<1x8x32xf32, #tpu.memory_space<vmem>>, vector<1x8x32xf32>
    %4 = vector.shape_cast %3 : vector<1x8x32xf32> to vector<8x32xf32>
    %c0_3 = arith.constant 0 : index
    %c0_4 = arith.constant 0 : index
    %c0_5 = arith.constant 0 : index
    %5 = vector.load %arg4[%c0_3, %c0_4, %c0_5] : memref<1x8x32xf32, #tpu.memory_space<vmem>>, vector<1x8x32xf32>
    %6 = vector.shape_cast %5 : vector<1x8x32xf32> to vector<8x32xf32>
    %c0_6 = arith.constant 0 : index
    %c0_7 = arith.constant 0 : index
    %c0_8 = arith.constant 0 : index
    %7 = vector.load %arg5[%c0_6, %c0_7, %c0_8] : memref<1x8x32xf32, #tpu.memory_space<vmem>>, vector<1x8x32xf32>
    %8 = vector.shape_cast %7 : vector<1x8x32xf32> to vector<8x32xf32>
    %c0_9 = arith.constant 0 : index
    %c0_10 = arith.constant 0 : index
    %c0_11 = arith.constant 0 : index
    %9 = vector.load %arg7[%c0_9, %c0_10, %c0_11] : memref<1x32x16xf32, #tpu.memory_space<vmem>>, vector<1x32x16xf32>
    %10 = vector.shape_cast %9 : vector<1x32x16xf32> to vector<32x16xf32>
    %cst = arith.constant dense<0.000000e+00> : vector<8x16xf32>
    %11 = tpu.matmul %4, %10, %cst {dimension_numbers = #tpu.dot_dimension_numbers<[1], [0], [0], [1], [0, 0, 1, 1], [], []>} : vector<8x32xf32>, vector<32x16xf32>, vector<8x16xf32> -> vector<8x16xf32>
    %c0_12 = arith.constant 0 : index
    %c0_13 = arith.constant 0 : index
    %c0_14 = arith.constant 0 : index
    %12 = vector.load %arg8[%c0_12, %c0_13, %c0_14] : memref<1x1x16xf32, #tpu.memory_space<vmem>>, vector<1x1x16xf32>
    %13 = vector.shape_cast %12 : vector<1x1x16xf32> to vector<1x16xf32>
    %14 = vector.broadcast %13 : vector<1x16xf32> to vector<8x16xf32>
    %15 = arith.addf %11, %14 : vector<8x16xf32>
    %c0_15 = arith.constant 0 : index
    %c0_16 = arith.constant 0 : index
    %c0_17 = arith.constant 0 : index
    %16 = vector.load %arg9[%c0_15, %c0_16, %c0_17] : memref<1x32x16xf32, #tpu.memory_space<vmem>>, vector<1x32x16xf32>
    %17 = vector.shape_cast %16 : vector<1x32x16xf32> to vector<32x16xf32>
    %cst_18 = arith.constant dense<0.000000e+00> : vector<8x16xf32>
    %18 = tpu.matmul %6, %17, %cst_18 {dimension_numbers = #tpu.dot_dimension_numbers<[1], [0], [0], [1], [0, 0, 1, 1], [], []>} : vector<8x32xf32>, vector<32x16xf32>, vector<8x16xf32> -> vector<8x16xf32>
    %c0_19 = arith.constant 0 : index
    %c0_20 = arith.constant 0 : index
    %c0_21 = arith.constant 0 : index
    %19 = vector.load %arg10[%c0_19, %c0_20, %c0_21] : memref<1x1x16xf32, #tpu.memory_space<vmem>>, vector<1x1x16xf32>
    %20 = vector.shape_cast %19 : vector<1x1x16xf32> to vector<1x16xf32>
    %21 = vector.broadcast %20 : vector<1x16xf32> to vector<8x16xf32>
    %22 = arith.addf %18, %21 : vector<8x16xf32>
    %c0_22 = arith.constant 0 : index
    %c0_23 = arith.constant 0 : index
    %c0_24 = arith.constant 0 : index
    %23 = vector.load %arg11[%c0_22, %c0_23, %c0_24] : memref<1x32x16xf32, #tpu.memory_space<vmem>>, vector<1x32x16xf32>
    %24 = vector.shape_cast %23 : vector<1x32x16xf32> to vector<32x16xf32>
    %cst_25 = arith.constant dense<0.000000e+00> : vector<8x16xf32>
    %25 = tpu.matmul %8, %24, %cst_25 {dimension_numbers = #tpu.dot_dimension_numbers<[1], [0], [0], [1], [0, 0, 1, 1], [], []>} : vector<8x32xf32>, vector<32x16xf32>, vector<8x16xf32> -> vector<8x16xf32>
    %c0_26 = arith.constant 0 : index
    %c0_27 = arith.constant 0 : index
    %c0_28 = arith.constant 0 : index
    %26 = vector.load %arg12[%c0_26, %c0_27, %c0_28] : memref<1x1x16xf32, #tpu.memory_space<vmem>>, vector<1x1x16xf32>
    %27 = vector.shape_cast %26 : vector<1x1x16xf32> to vector<1x16xf32>
    %28 = vector.broadcast %27 : vector<1x16xf32> to vector<8x16xf32>
    %29 = arith.addf %25, %28 : vector<8x16xf32>
    %cst_29 = arith.constant dense<0.000000e+00> : vector<8x8xf32>
    %30 = tpu.matmul %15, %22, %cst_29 {dimension_numbers = #tpu.dot_dimension_numbers<[1], [1], [0], [0], [0, 0, 1, 0], [], []>} : vector<8x16xf32>, vector<8x16xf32>, vector<8x8xf32> -> vector<8x8xf32>
    %c0_30 = arith.constant 0 : index
    %c0_31 = arith.constant 0 : index
    %31 = vector.load %arg6[%c0_30, %c0_31] : memref<8x8xf32, #tpu.memory_space<vmem>>, vector<8x8xf32>
    %32 = arith.addf %30, %31 : vector<8x8xf32>
    %cst_32 = arith.constant dense<0xFF800000> : vector<8xf32>
    %33 = vector.multi_reduction <maximumf>, %32, %cst_32 [1] : vector<8x8xf32> to vector<8xf32>
    %34 = vector.shape_cast %33 : vector<8xf32> to vector<8x1xf32>
    %35 = vector.broadcast %34 : vector<8x1xf32> to vector<8x8xf32>
    %36 = arith.subf %32, %35 : vector<8x8xf32>
    %37 = math.exp %36 : vector<8x8xf32>
    %cst_33 = arith.constant dense<0.000000e+00> : vector<8xf32>
    %38 = vector.multi_reduction <add>, %37, %cst_33 [1] : vector<8x8xf32> to vector<8xf32>
    %39 = vector.shape_cast %38 : vector<8xf32> to vector<8x1xf32>
    %40 = tpu.reciprocal %39 {approx = true} : vector<8x1xf32> -> vector<8x1xf32>
    %41 = vector.broadcast %40 : vector<8x1xf32> to vector<8x8xf32>
    %42 = arith.mulf %37, %41 : vector<8x8xf32>
    %cst_34 = arith.constant dense<0.000000e+00> : vector<8x16xf32>
    %43 = tpu.matmul %42, %29, %cst_34 {dimension_numbers = #tpu.dot_dimension_numbers<[1], [0], [0], [1], [0, 0, 1, 1], [], []>} : vector<8x8xf32>, vector<8x16xf32>, vector<8x16xf32> -> vector<8x16xf32>
    %c0_35 = arith.constant 0 : index
    %c0_36 = arith.constant 0 : index
    %44 = vector.load %arg16[%c0_35, %c0_36] : memref<8x32xf32, #tpu.memory_space<vmem>>, vector<8x32xf32>
    %c0_37 = arith.constant 0 : index
    %c0_38 = arith.constant 0 : index
    %c0_39 = arith.constant 0 : index
    %45 = vector.load %arg13[%c0_37, %c0_38, %c0_39] : memref<1x16x32xf32, #tpu.memory_space<vmem>>, vector<1x16x32xf32>
    %46 = vector.shape_cast %45 : vector<1x16x32xf32> to vector<16x32xf32>
    %cst_40 = arith.constant dense<0.000000e+00> : vector<8x32xf32>
    %47 = tpu.matmul %43, %46, %cst_40 {dimension_numbers = #tpu.dot_dimension_numbers<[1], [0], [0], [1], [0, 0, 1, 1], [], []>} : vector<8x16xf32>, vector<16x32xf32>, vector<8x32xf32> -> vector<8x32xf32>
    %48 = arith.addf %44, %47 : vector<8x32xf32>
    %c0_41 = arith.constant 0 : index
    %c0_42 = arith.constant 0 : index
    %49 = vector.load %arg16[%c0_41, %c0_42] : memref<8x32xf32, #tpu.memory_space<vmem>>, vector<8x32xf32>
    tpu.vector_store %arg16[%c0_41, %c0_42], %48 {strides = array<i32>} : memref<8x32xf32, #tpu.memory_space<vmem>>, vector<8x32xf32>,
    %c1_i32 = arith.constant 1 : i32
    %50 = arith.cmpi eq, %arg2, %c1_i32 : i32
    %51 = arith.extui %50 : i1 to i32
    %c0_i32_43 = arith.constant 0 : i32
    %52 = arith.cmpi ne, %51, %c0_i32_43 : i32
    scf.if %52 {
      %c0_44 = arith.constant 0 : index
      %c0_45 = arith.constant 0 : index
      %53 = vector.load %arg16[%c0_44, %c0_45] : memref<8x32xf32, #tpu.memory_space<vmem>>, vector<8x32xf32>
      %c0_46 = arith.constant 0 : index
      %c0_47 = arith.constant 0 : index
      %54 = vector.load %arg14[%c0_46, %c0_47] : memref<1x32xf32, #tpu.memory_space<vmem>>, vector<1x32xf32>
      %55 = vector.broadcast %54 : vector<1x32xf32> to vector<8x32xf32>
      %56 = arith.addf %53, %55 : vector<8x32xf32>
      %c0_48 = arith.constant 0 : index
      %c0_49 = arith.constant 0 : index
      %c0_50 = arith.constant 0 : index
      %57 = vector.load %arg15[%c0_48, %c0_49, %c0_50] : memref<1x8x32xf32, #tpu.memory_space<vmem>>, vector<1x8x32xf32>
      %58 = vector.shape_cast %57 : vector<1x8x32xf32> to vector<8x32xf32>
      %59 = vector.shape_cast %56 : vector<8x32xf32> to vector<1x8x32xf32>
      tpu.vector_store %arg15[%c0_48, %c0_49, %c0_50], %59 {strides = array<i32>} : memref<1x8x32xf32, #tpu.memory_space<vmem>>, vector<1x8x32xf32>,
    } else {
    }
    return
  }
  func.func @transform_0(%arg0: i32, %arg1: i32, %arg2: i32) -> (i32, i32, i32) {
    %c0_i32 = arith.constant 0 : i32
    %c0_i32_0 = arith.constant 0 : i32
    return %arg0, %arg1, %c0_i32 : i32, i32, i32
  }
  func.func @transform_1(%arg0: i32, %arg1: i32, %arg2: i32) -> (i32, i32, i32) {
    %c0_i32 = arith.constant 0 : i32
    %c0_i32_0 = arith.constant 0 : i32
    %c0_i32_1 = arith.constant 0 : i32
    return %arg0, %c0_i32, %c0_i32_0 : i32, i32, i32
  }
  func.func @transform_2(%arg0: i32, %arg1: i32, %arg2: i32) -> (i32, i32, i32) {
    %c0_i32 = arith.constant 0 : i32
    %c0_i32_0 = arith.constant 0 : i32
    %c0_i32_1 = arith.constant 0 : i32
    return %arg0, %c0_i32, %c0_i32_0 : i32, i32, i32
  }
  func.func @transform_3(%arg0: i32, %arg1: i32, %arg2: i32) -> (i32, i32) {
    %c0_i32 = arith.constant 0 : i32
    %c0_i32_0 = arith.constant 0 : i32
    return %arg1, %c0_i32 : i32, i32
  }
  func.func @transform_4(%arg0: i32, %arg1: i32, %arg2: i32) -> (i32, i32, i32) {
    %c0_i32 = arith.constant 0 : i32
    %c0_i32_0 = arith.constant 0 : i32
    %c0_i32_1 = arith.constant 0 : i32
    return %arg2, %c0_i32, %c0_i32_0 : i32, i32, i32
  }
  func.func @transform_5(%arg0: i32, %arg1: i32, %arg2: i32) -> (i32, i32, i32) {
    %c0_i32 = arith.constant 0 : i32
    %c0_i32_0 = arith.constant 0 : i32
    %c0_i32_1 = arith.constant 0 : i32
    return %arg2, %c0_i32, %c0_i32_0 : i32, i32, i32
  }
  func.func @transform_6(%arg0: i32, %arg1: i32, %arg2: i32) -> (i32, i32, i32) {
    %c0_i32 = arith.constant 0 : i32
    %c0_i32_0 = arith.constant 0 : i32
    %c0_i32_1 = arith.constant 0 : i32
    return %arg2, %c0_i32, %c0_i32_0 : i32, i32, i32
  }
  func.func @transform_7(%arg0: i32, %arg1: i32, %arg2: i32) -> (i32, i32, i32) {
    %c0_i32 = arith.constant 0 : i32
    %c0_i32_0 = arith.constant 0 : i32
    %c0_i32_1 = arith.constant 0 : i32
    return %arg2, %c0_i32, %c0_i32_0 : i32, i32, i32
  }
  func.func @transform_8(%arg0: i32, %arg1: i32, %arg2: i32) -> (i32, i32, i32) {
    %c0_i32 = arith.constant 0 : i32
    %c0_i32_0 = arith.constant 0 : i32
    %c0_i32_1 = arith.constant 0 : i32
    return %arg2, %c0_i32, %c0_i32_0 : i32, i32, i32
  }
  func.func @transform_9(%arg0: i32, %arg1: i32, %arg2: i32) -> (i32, i32, i32) {
    %c0_i32 = arith.constant 0 : i32
    %c0_i32_0 = arith.constant 0 : i32
    %c0_i32_1 = arith.constant 0 : i32
    return %arg2, %c0_i32, %c0_i32_0 : i32, i32, i32
  }
  func.func @transform_10(%arg0: i32, %arg1: i32, %arg2: i32) -> (i32, i32, i32) {
    %c0_i32 = arith.constant 0 : i32
    %c0_i32_0 = arith.constant 0 : i32
    %c0_i32_1 = arith.constant 0 : i32
    return %arg2, %c0_i32, %c0_i32_0 : i32, i32, i32
  }
  func.func @transform_11(%arg0: i32, %arg1: i32, %arg2: i32) -> (i32, i32) {
    %c0_i32 = arith.constant 0 : i32
    %c0_i32_0 = arith.constant 0 : i32
    %c0_i32_1 = arith.constant 0 : i32
    return %c0_i32, %c0_i32_0 : i32, i32
  }
  func.func @transform_12(%arg0: i32, %arg1: i32, %arg2: i32) -> (i32, i32, i32) {
    %c0_i32 = arith.constant 0 : i32
    %c0_i32_0 = arith.constant 0 : i32
    return %arg0, %arg1, %c0_i32 : i32, i32, i32
  }
}

</mosaic_0001>

<llo_original>
// kernel: tpu_custom_call.1
$region0: #{tpu_custom_call.1}
  #allocation0 [shape = 'u32[]', space=smem, size = 0x4, offset = 0x4, fixed_abs, tag = 'smem constant byte address 0x4 - core index']
  #allocation1 [shape = 'u32[144,128]{1,0:T(1,128)}', space=vmem, size = 0x12000, scoped, tag = 'internal scratch']
  #allocation2 [shape = 'f32[8,32]{1,0:T(8,128)}', space=vmem, size = 0x1000, scoped, tag = 'scratch operand']
  %s0 = inlined_call_operand.vmem [shape: f32[2,8,32], index: 0, kind: input, shape index: {}]
  %s1 = inlined_call_operand.vmem [shape: f32[2,8,32], index: 1, kind: input, shape index: {}]
  %s2 = inlined_call_operand.vmem [shape: f32[2,8,32], index: 2, kind: input, shape index: {}]
  %s3 = inlined_call_operand.vmem [shape: f32[8,8], index: 3, kind: input, shape index: {}]
  %s4 = inlined_call_operand.vmem [shape: f32[2,32,16], index: 4, kind: input, shape index: {}]
  %s5 = inlined_call_operand.vmem [shape: f32[2,1,16], index: 5, kind: input, shape index: {}]
  %s6 = inlined_call_operand.vmem [shape: f32[2,32,16], index: 6, kind: input, shape index: {}]
  %s7 = inlined_call_operand.vmem [shape: f32[2,1,16], index: 7, kind: input, shape index: {}]
  %s8 = inlined_call_operand.vmem [shape: f32[2,32,16], index: 8, kind: input, shape index: {}]
  %s9 = inlined_call_operand.vmem [shape: f32[2,1,16], index: 9, kind: input, shape index: {}]
  %s10 = inlined_call_operand.vmem [shape: f32[2,16,32], index: 10, kind: input, shape index: {}]
  %s11 = inlined_call_operand.vmem [shape: f32[1,32], index: 11, kind: input, shape index: {}]
  %s12 = inlined_call_operand.hbm [shape: f32[2,8,32], index: 12, kind: output, shape index: {}]
  %s13 = sld [smem:[#allocation0]]
  $region89: #{tpu_custom_call.1} parent=0
    _
  %s15 = ssub.s32 1, %s13
  %s16 = scalar_select 0, %s15, %s13
  $region1: #{tpu_custom_call.1} parent=0
    #allocation3 [shape = 'u8[8192]{0}', space=vmem, size = 0x2000, scoped, tag = 'output window, operand 0']
    #allocation4 [shape = 's32[2]{0}', space=sflag, size = 0x8, scoped, tag = 'scoped memory for tpu_custom_call.1']
    %17 = vsyncpa [#allocation4], 0
    %s18 = scalar_lea.sflag [#allocation4], 1
    %19 = vsyncpa %s18, 0
    loop: start=0, step=1, limit=6
    $region2: #{tpu_custom_call.1} parent=1 // loop_pre_header
      _
    $region3: #{tpu_custom_call.1} parent=1 // loop_header
      %s21 = sphi 0, %s25
      %p22 = scmp.ge.s32.totalorder %s21, 6
      %s28 = sphi 0, %s47
      %s29 = sphi 0, %s43
      %s30 = sphi 0, %s39
      %s31 = sphi 0, %s28
      %s32 = sphi 0, %s29
      %s33 = sphi 0, %s30
      %s34 = sphi 0, %s31
      %s35 = sphi 0, %s32
      %s36 = sphi 0, %s33
      %s52 = sphi 0, %s54
      %s55 = sphi 0, %s52
      %s56 = sphi 0, %s55
      %s72 = sphi 0, %s56
      %s78 = sphi 0, %s80
      %s81 = sphi 0, %s78
      %s82 = sphi 0, %s81
      %s98 = sphi 0, %s82
      %s104 = sphi 0, %s106
      %s107 = sphi 0, %s104
      %s108 = sphi 0, %s107
      %s124 = sphi 0, %s108
      %s130 = sphi 0, %s132
      %s133 = sphi 0, %s130
      %s134 = sphi 0, %s133
      %s150 = sphi 0, %s134
      %s156 = sphi 0, %s158
      %s159 = sphi 0, %s156
      %s160 = sphi 0, %s159
      %s176 = sphi 0, %s160
      %s182 = sphi 0, %s184
      %s185 = sphi 0, %s182
      %s186 = sphi 0, %s185
      %s202 = sphi 0, %s186
      %s208 = sphi 0, %s210
      %s211 = sphi 0, %s208
      %s212 = sphi 0, %s211
      %s228 = sphi 0, %s212
      %s234 = sphi 0, %s236
      %s237 = sphi 0, %s234
      %s238 = sphi 0, %s237
      %s254 = sphi 0, %s238
      %s260 = sphi 0, %s262
      %s263 = sphi 0, %s260
      %s264 = sphi 0, %s263
      %s280 = sphi 0, %s264
      %s286 = sphi 0, %s288
      %s289 = sphi 0, %s286
      %s290 = sphi 0, %s289
      %s306 = sphi 0, %s290
      %s312 = sphi 0, %s314
      %s315 = sphi 0, %s312
      %s316 = sphi 0, %s315
      %s332 = sphi 0, %s316
      %s336 = sphi 0, %s336
      %s338 = sphi 0, %s336
      %s339 = sphi 0, %s338
      %s353 = sphi 0, %s339
      %s361 = sphi 0, %s363
      %s364 = sphi 0, %s361
      %s365 = sphi 0, %s364
      %s381 = sphi 0, %s365
    $region4: #{tpu_custom_call.1} parent=1 // loop_header_branch
      %24 = sbr.rel (%p22) target = $region8
    $region5: #{tpu_custom_call.1} parent=1 // loop_body
      %s26 = ssub.s32 %s21, 1
      %s27 = ssub.s32 %s21, 2
      %s37 = sadd.s32 1, %s30
      %p38 = scmp.ge.s32.totalorder %s37, 2
      %s39 = scalar_select %p38, 0, %s37
      %s40 = sadd.s32 1, %s29
      %s41 = scalar_select %p38, %s40, %s29
      %p42 = scmp.ge.s32.totalorder %s41, 1
      %s43 = scalar_select %p42, 0, %s41
      %s44 = sadd.s32 1, %s28
      %s45 = scalar_select %p42, %s44, %s28
      %p46 = scmp.ge.s32.totalorder %s45, 2
      %s47 = scalar_select %p46, 0, %s45
      %s48 = ssub.s32 %s28, %s47
      %s49 = ssub.s32 %s29, %s43
      %s50 = sor.u32 %s48, %s49
      %p51 = scmp.eq.s32.totalorder %s50, 0
      %s53 = sadd.s32 %s52, 1
      %s54 = scalar_select %p51, %s52, %s53
      %p57 = pneg %p51
      %p58 = scmp.eq.s32.totalorder %s21, 3
      %p59 = por %p57, %p58
      %p60 = scmp.ne.s32.totalorder %s52, %s55
      %p61 = scmp.eq.s32.totalorder %s21, 0
      %p62 = por %p60, %p61
      %p63 = scmp.ne.s32.totalorder %s52, %s55
      %p64 = scmp.eq.s32.totalorder %s26, 3
      %p65 = por %p63, %p64
      %p66 = scmp.ne.s32.totalorder %s55, %s56
      %p67 = scmp.eq.s32.totalorder %s26, 0
      %p68 = por %p66, %p67
      %p69 = scmp.ne.s32.totalorder %s55, %s56
      %p70 = scmp.eq.s32.totalorder %s27, 3
      %p71 = por %p69, %p70
      %p73 = scmp.ne.s32.totalorder %s56, %s72
      %p74 = scmp.eq.s32.totalorder %s27, 0
      %p75 = por %p73, %p74
      %s76 = ssub.s32 %s28, %s47
      %p77 = scmp.eq.s32.totalorder %s76, 0
      %s79 = sadd.s32 %s78, 1
      %s80 = scalar_select %p77, %s78, %s79
      %p83 = pneg %p77
      %p84 = scmp.eq.s32.totalorder %s21, 3
      %p85 = por %p83, %p84
      %p86 = scmp.ne.s32.totalorder %s78, %s81
      %p87 = scmp.eq.s32.totalorder %s21, 0
      %p88 = por %p86, %p87
      %p89 = scmp.ne.s32.totalorder %s78, %s81
      %p90 = scmp.eq.s32.totalorder %s26, 3
      %p91 = por %p89, %p90
      %p92 = scmp.ne.s32.totalorder %s81, %s82
      %p93 = scmp.eq.s32.totalorder %s26, 0
      %p94 = por %p92, %p93
      %p95 = scmp.ne.s32.totalorder %s81, %s82
      %p96 = scmp.eq.s32.totalorder %s27, 3
      %p97 = por %p95, %p96
      %p99 = scmp.ne.s32.totalorder %s82, %s98
      %p100 = scmp.eq.s32.totalorder %s27, 0
      %p101 = por %p99, %p100
      %s102 = ssub.s32 %s28, %s47
      %p103 = scmp.eq.s32.totalorder %s102, 0
      %s105 = sadd.s32 %s104, 1
      %s106 = scalar_select %p103, %s104, %s105
      %p109 = pneg %p103
      %p110 = scmp.eq.s32.totalorder %s21, 3
      %p111 = por %p109, %p110
      %p112 = scmp.ne.s32.totalorder %s104, %s107
      %p113 = scmp.eq.s32.totalorder %s21, 0
      %p114 = por %p112, %p113
      %p115 = scmp.ne.s32.totalorder %s104, %s107
      %p116 = scmp.eq.s32.totalorder %s26, 3
      %p117 = por %p115, %p116
      %p118 = scmp.ne.s32.totalorder %s107, %s108
      %p119 = scmp.eq.s32.totalorder %s26, 0
      %p120 = por %p118, %p119
      %p121 = scmp.ne.s32.totalorder %s107, %s108
      %p122 = scmp.eq.s32.totalorder %s27, 3
      %p123 = por %p121, %p122
      %p125 = scmp.ne.s32.totalorder %s108, %s124
      %p126 = scmp.eq.s32.totalorder %s27, 0
      %p127 = por %p125, %p126
      %s128 = ssub.s32 %s29, %s43
      %p129 = scmp.eq.s32.totalorder %s128, 0
      %s131 = sadd.s32 %s130, 1
      %s132 = scalar_select %p129, %s130, %s131
      %p135 = pneg %p129
      %p136 = scmp.eq.s32.totalorder %s21, 3
      %p137 = por %p135, %p136
      %p138 = scmp.ne.s32.totalorder %s130, %s133
      %p139 = scmp.eq.s32.totalorder %s21, 0
      %p140 = por %p138, %p139
      %p141 = scmp.ne.s32.totalorder %s130, %s133
      %p142 = scmp.eq.s32.totalorder %s26, 3
      %p143 = por %p141, %p142
      %p144 = scmp.ne.s32.totalorder %s133, %s134
      %p145 = scmp.eq.s32.totalorder %s26, 0
      %p146 = por %p144, %p145
      %p147 = scmp.ne.s32.totalorder %s133, %s134
      %p148 = scmp.eq.s32.totalorder %s27, 3
      %p149 = por %p147, %p148
      %p151 = scmp.ne.s32.totalorder %s134, %s150
      %p152 = scmp.eq.s32.totalorder %s27, 0
      %p153 = por %p151, %p152
      %s154 = ssub.s32 %s30, %s39
      %p155 = scmp.eq.s32.totalorder %s154, 0
      %s157 = sadd.s32 %s156, 1
      %s158 = scalar_select %p155, %s156, %s157
      %p161 = pneg %p155
      %p162 = scmp.eq.s32.totalorder %s21, 3
      %p163 = por %p161, %p162
      %p164 = scmp.ne.s32.totalorder %s156, %s159
      %p165 = scmp.eq.s32.totalorder %s21, 0
      %p166 = por %p164, %p165
      %p167 = scmp.ne.s32.totalorder %s156, %s159
      %p168 = scmp.eq.s32.totalorder %s26, 3
      %p169 = por %p167, %p168
      %p170 = scmp.ne.s32.totalorder %s159, %s160
      %p171 = scmp.eq.s32.totalorder %s26, 0
      %p172 = por %p170, %p171
      %p173 = scmp.ne.s32.totalorder %s159, %s160
      %p174 = scmp.eq.s32.totalorder %s27, 3
      %p175 = por %p173, %p174
      %p177 = scmp.ne.s32.totalorder %s160, %s176
      %p178 = scmp.eq.s32.totalorder %s27, 0
      %p179 = por %p177, %p178
      %s180 = ssub.s32 %s30, %s39
      %p181 = scmp.eq.s32.totalorder %s180, 0
      %s183 = sadd.s32 %s182, 1
      %s184 = scalar_select %p181, %s182, %s183
      %p187 = pneg %p181
      %p188 = scmp.eq.s32.totalorder %s21, 3
      %p189 = por %p187, %p188
      %p190 = scmp.ne.s32.totalorder %s182, %s185
      %p191 = scmp.eq.s32.totalorder %s21, 0
      %p192 = por %p190, %p191
      %p193 = scmp.ne.s32.totalorder %s182, %s185
      %p194 = scmp.eq.s32.totalorder %s26, 3
      %p195 = por %p193, %p194
      %p196 = scmp.ne.s32.totalorder %s185, %s186
      %p197 = scmp.eq.s32.totalorder %s26, 0
      %p198 = por %p196, %p197
      %p199 = scmp.ne.s32.totalorder %s185, %s186
      %p200 = scmp.eq.s32.totalorder %s27, 3
      %p201 = por %p199, %p200
      %p203 = scmp.ne.s32.totalorder %s186, %s202
      %p204 = scmp.eq.s32.totalorder %s27, 0
      %p205 = por %p203, %p204
      %s206 = ssub.s32 %s30, %s39
      %p207 = scmp.eq.s32.totalorder %s206, 0
      %s209 = sadd.s32 %s208, 1
      %s210 = scalar_select %p207, %s208, %s209
      %p213 = pneg %p207
      %p214 = scmp.eq.s32.totalorder %s21, 3
      %p215 = por %p213, %p214
      %p216 = scmp.ne.s32.totalorder %s208, %s211
      %p217 = scmp.eq.s32.totalorder %s21, 0
      %p218 = por %p216, %p217
      %p219 = scmp.ne.s32.totalorder %s208, %s211
      %p220 = scmp.eq.s32.totalorder %s26, 3
      %p221 = por %p219, %p220
      %p222 = scmp.ne.s32.totalorder %s211, %s212
      %p223 = scmp.eq.s32.totalorder %s26, 0
      %p224 = por %p222, %p223
      %p225 = scmp.ne.s32.totalorder %s211, %s212
      %p226 = scmp.eq.s32.totalorder %s27, 3
      %p227 = por %p225, %p226
      %p229 = scmp.ne.s32.totalorder %s212, %s228
      %p230 = scmp.eq.s32.totalorder %s27, 0
      %p231 = por %p229, %p230
      %s232 = ssub.s32 %s30, %s39
      %p233 = scmp.eq.s32.totalorder %s232, 0
      %s235 = sadd.s32 %s234, 1
      %s236 = scalar_select %p233, %s234, %s235
      %p239 = pneg %p233
      %p240 = scmp.eq.s32.totalorder %s21, 3
      %p241 = por %p239, %p240
      %p242 = scmp.ne.s32.totalorder %s234, %s237
      %p243 = scmp.eq.s32.totalorder %s21, 0
      %p244 = por %p242, %p243
      %p245 = scmp.ne.s32.totalorder %s234, %s237
      %p246 = scmp.eq.s32.totalorder %s26, 3
      %p247 = por %p245, %p246
      %p248 = scmp.ne.s32.totalorder %s237, %s238
      %p249 = scmp.eq.s32.totalorder %s26, 0
      %p250 = por %p248, %p249
      %p251 = scmp.ne.s32.totalorder %s237, %s238
      %p252 = scmp.eq.s32.totalorder %s27, 3
      %p253 = por %p251, %p252
      %p255 = scmp.ne.s32.totalorder %s238, %s254
      %p256 = scmp.eq.s32.totalorder %s27, 0
      %p257 = por %p255, %p256
      %s258 = ssub.s32 %s30, %s39
      %p259 = scmp.eq.s32.totalorder %s258, 0
      %s261 = sadd.s32 %s260, 1
      %s262 = scalar_select %p259, %s260, %s261
      %p265 = pneg %p259
      %p266 = scmp.eq.s32.totalorder %s21, 3
      %p267 = por %p265, %p266
      %p268 = scmp.ne.s32.totalorder %s260, %s263
      %p269 = scmp.eq.s32.totalorder %s21, 0
      %p270 = por %p268, %p269
      %p271 = scmp.ne.s32.totalorder %s260, %s263
      %p272 = scmp.eq.s32.totalorder %s26, 3
      %p273 = por %p271, %p272
      %p274 = scmp.ne.s32.totalorder %s263, %s264
      %p275 = scmp.eq.s32.totalorder %s26, 0
      %p276 = por %p274, %p275
      %p277 = scmp.ne.s32.totalorder %s263, %s264
      %p278 = scmp.eq.s32.totalorder %s27, 3
      %p279 = por %p277, %p278
      %p281 = scmp.ne.s32.totalorder %s264, %s280
      %p282 = scmp.eq.s32.totalorder %s27, 0
      %p283 = por %p281, %p282
      %s284 = ssub.s32 %s30, %s39
      %p285 = scmp.eq.s32.totalorder %s284, 0
      %s287 = sadd.s32 %s286, 1
      %s288 = scalar_select %p285, %s286, %s287
      %p291 = pneg %p285
      %p292 = scmp.eq.s32.totalorder %s21, 3
      %p293 = por %p291, %p292
      %p294 = scmp.ne.s32.totalorder %s286, %s289
      %p295 = scmp.eq.s32.totalorder %s21, 0
      %p296 = por %p294, %p295
      %p297 = scmp.ne.s32.totalorder %s286, %s289
      %p298 = scmp.eq.s32.totalorder %s26, 3
      %p299 = por %p297, %p298
      %p300 = scmp.ne.s32.totalorder %s289, %s290
      %p301 = scmp.eq.s32.totalorder %s26, 0
      %p302 = por %p300, %p301
      %p303 = scmp.ne.s32.totalorder %s289, %s290
      %p304 = scmp.eq.s32.totalorder %s27, 3
      %p305 = por %p303, %p304
      %p307 = scmp.ne.s32.totalorder %s290, %s306
      %p308 = scmp.eq.s32.totalorder %s27, 0
      %p309 = por %p307, %p308
      %s310 = ssub.s32 %s30, %s39
      %p311 = scmp.eq.s32.totalorder %s310, 0
      %s313 = sadd.s32 %s312, 1
      %s314 = scalar_select %p311, %s312, %s313
      %p317 = pneg %p311
      %p318 = scmp.eq.s32.totalorder %s21, 3
      %p319 = por %p317, %p318
      %p320 = scmp.ne.s32.totalorder %s312, %s315
      %p321 = scmp.eq.s32.totalorder %s21, 0
      %p322 = por %p320, %p321
      %p323 = scmp.ne.s32.totalorder %s312, %s315
      %p324 = scmp.eq.s32.totalorder %s26, 3
      %p325 = por %p323, %p324
      %p326 = scmp.ne.s32.totalorder %s315, %s316
      %p327 = scmp.eq.s32.totalorder %s26, 0
      %p328 = por %p326, %p327
      %p329 = scmp.ne.s32.totalorder %s315, %s316
      %p330 = scmp.eq.s32.totalorder %s27, 3
      %p331 = por %p329, %p330
      %p333 = scmp.ne.s32.totalorder %s316, %s332
      %p334 = scmp.eq.s32.totalorder %s27, 0
      %p335 = por %p333, %p334
      %s337 = sadd.s32 %s336, 1
      %p340 = scmp.eq.s32.totalorder %s21, 3
      %p341 = scmp.ne.s32.totalorder %s336, %s338
      %p342 = scmp.eq.s32.totalorder %s21, 0
      %p343 = por %p341, %p342
      %p344 = scmp.ne.s32.totalorder %s336, %s338
      %p345 = scmp.eq.s32.totalorder %s26, 3
      %p346 = por %p344, %p345
      %p347 = scmp.ne.s32.totalorder %s338, %s339
      %p348 = scmp.eq.s32.totalorder %s26, 0
      %p349 = por %p347, %p348
      %p350 = scmp.ne.s32.totalorder %s338, %s339
      %p351 = scmp.eq.s32.totalorder %s27, 3
      %p352 = por %p350, %p351
      %p354 = scmp.ne.s32.totalorder %s339, %s353
      %p355 = scmp.eq.s32.totalorder %s27, 0
      %p356 = por %p354, %p355
      %s357 = ssub.s32 %s28, %s47
      %s358 = ssub.s32 %s29, %s43
      %s359 = sor.u32 %s357, %s358
      %p360 = scmp.eq.s32.totalorder %s359, 0
      %s362 = sadd.s32 %s361, 1
      %s363 = scalar_select %p360, %s361, %s362
      %p366 = pneg %p360
      %p367 = scmp.eq.s32.totalorder %s21, 3
      %p368 = por %p366, %p367
      %p369 = scmp.ne.s32.totalorder %s361, %s364
      %p370 = scmp.eq.s32.totalorder %s21, 0
      %p371 = por %p369, %p370
      %p372 = scmp.ne.s32.totalorder %s361, %s364
      %p373 = scmp.eq.s32.totalorder %s26, 3
      %p374 = por %p372, %p373
      %p375 = scmp.ne.s32.totalorder %s364, %s365
      %p376 = scmp.eq.s32.totalorder %s26, 0
      %p377 = por %p375, %p376
      %p378 = scmp.ne.s32.totalorder %s364, %s365
      %p379 = scmp.eq.s32.totalorder %s27, 3
      %p380 = por %p378, %p379
      %p382 = scmp.ne.s32.totalorder %s365, %s381
      %p383 = scmp.eq.s32.totalorder %s27, 0
      %p384 = por %p382, %p383
      %p385 = scmp.le.s32.totalorder 1, %s21
      %p386 = scmp.lt.s32.totalorder %s21, 5
      %p387 = pnand %p385, %p386
      %p388 = pneg %p387
      // Predicated region
      $region9: #{tpu_custom_call.1} parent=5 // pred_check
        _
      $region10: #{tpu_custom_call.1} parent=5 // pred_check_branch
        %390 = sbr.rel (%p387) target = $region12
      $region11: #{tpu_custom_call.1} parent=5 // pred_region
        %s391 = ssub.s32 %s21, 1
        // Predicated region
        $region13: #{tpu_custom_call.1} parent=11 // pred_check
          %p392 = pneg %p146
        $region14: #{tpu_custom_call.1} parent=11 // pred_check_branch
          %394 = sbr.rel (%p392) target = $region16
        $region15: #{tpu_custom_call.1} parent=11 // pred_region
          %p395 = scmp.lt.s32.totalorder %s32, 0
          %s396 = scalar_select %p395, %s32, 0
          %s397 = smul.addr %s396, 8
          %s398 = scalar_lea.vmem %s3, %s397
        $region16: #{tpu_custom_call.1} parent=11 // pred_fallthru
          _
        // Predicated region
        $region17: #{tpu_custom_call.1} parent=11 // pred_check
          %p399 = pneg %p349
        $region18: #{tpu_custom_call.1} parent=11 // pred_check_branch
          %401 = sbr.rel (%p399) target = $region20
        $region19: #{tpu_custom_call.1} parent=11 // pred_region
          _
        $region20: #{tpu_custom_call.1} parent=11 // pred_fallthru
          _
      $region12: #{tpu_custom_call.1} parent=5 // pred_fallthru
        _
      %p402 = scmp.lt.s32.totalorder %s21, 4
      // Predicated region
      $region21: #{tpu_custom_call.1} parent=5 // pred_check
        %p403 = pneg %p402
      $region22: #{tpu_custom_call.1} parent=5 // pred_check_branch
        %405 = sbr.rel (%p403) target = $region24
      $region23: #{tpu_custom_call.1} parent=5 // pred_region
        // Predicated region
        $region25: #{tpu_custom_call.1} parent=23 // pred_check
          %p406 = pneg %p62
        $region26: #{tpu_custom_call.1} parent=23 // pred_check_branch
          %408 = sbr.rel (%p406) target = $region28
        $region27: #{tpu_custom_call.1} parent=23 // pred_region
          %p409 = scmp.lt.s32.totalorder %s28, 1
          %s410 = scalar_select %p409, %s28, 1
          %p411 = scmp.lt.s32.totalorder %s29, 0
          %s412 = scalar_select %p411, %s29, 0
          %s413 = sadd.s32 %s412, %s410
          %s414 = smul.addr %s413, 8
          %s415 = scalar_lea.vmem %s0, %s414
        $region28: #{tpu_custom_call.1} parent=23 // pred_fallthru
          _
        // Predicated region
        $region29: #{tpu_custom_call.1} parent=23 // pred_check
          %p416 = pneg %p88
        $region30: #{tpu_custom_call.1} parent=23 // pred_check_branch
          %418 = sbr.rel (%p416) target = $region32
        $region31: #{tpu_custom_call.1} parent=23 // pred_region
          %p419 = scmp.lt.s32.totalorder %s28, 1
          %s420 = scalar_select %p419, %s28, 1
          %s421 = smul.addr %s420, 8
          %s422 = scalar_lea.vmem %s1, %s421
        $region32: #{tpu_custom_call.1} parent=23 // pred_fallthru
          _
        // Predicated region
        $region33: #{tpu_custom_call.1} parent=23 // pred_check
          %p423 = pneg %p114
        $region34: #{tpu_custom_call.1} parent=23 // pred_check_branch
          %425 = sbr.rel (%p423) target = $region36
        $region35: #{tpu_custom_call.1} parent=23 // pred_region
          %p426 = scmp.lt.s32.totalorder %s28, 1
          %s427 = scalar_select %p426, %s28, 1
          %s428 = smul.addr %s427, 8
          %s429 = scalar_lea.vmem %s2, %s428
        $region36: #{tpu_custom_call.1} parent=23 // pred_fallthru
          _
        // Predicated region
        $region37: #{tpu_custom_call.1} parent=23 // pred_check
          %p430 = pneg %p166
        $region38: #{tpu_custom_call.1} parent=23 // pred_check_branch
          %432 = sbr.rel (%p430) target = $region40
        $region39: #{tpu_custom_call.1} parent=23 // pred_region
          %p433 = scmp.lt.s32.totalorder %s30, 1
          %s434 = scalar_select %p433, %s30, 1
          %s435 = smul.addr %s434, 4
          %s436 = smul.addr %s435, 8
          %s437 = scalar_lea.vmem %s4, %s436
        $region40: #{tpu_custom_call.1} parent=23 // pred_fallthru
          _
        // Predicated region
        $region41: #{tpu_custom_call.1} parent=23 // pred_check
          %p438 = pneg %p192
        $region42: #{tpu_custom_call.1} parent=23 // pred_check_branch
          %440 = sbr.rel (%p438) target = $region44
        $region43: #{tpu_custom_call.1} parent=23 // pred_region
          %p441 = scmp.lt.s32.totalorder %s30, 1
          %s442 = scalar_select %p441, %s30, 1
          %s443 = scalar_lea.vmem %s5, %s442
        $region44: #{tpu_custom_call.1} parent=23 // pred_fallthru
          _
        // Predicated region
        $region45: #{tpu_custom_call.1} parent=23 // pred_check
          %p444 = pneg %p218
        $region46: #{tpu_custom_call.1} parent=23 // pred_check_branch
          %446 = sbr.rel (%p444) target = $region48
        $region47: #{tpu_custom_call.1} parent=23 // pred_region
          %p447 = scmp.lt.s32.totalorder %s30, 1
          %s448 = scalar_select %p447, %s30, 1
          %s449 = smul.addr %s448, 4
          %s450 = smul.addr %s449, 8
          %s451 = scalar_lea.vmem %s6, %s450
        $region48: #{tpu_custom_call.1} parent=23 // pred_fallthru
          _
        // Predicated region
        $region49: #{tpu_custom_call.1} parent=23 // pred_check
          %p452 = pneg %p244
        $region50: #{tpu_custom_call.1} parent=23 // pred_check_branch
          %454 = sbr.rel (%p452) target = $region52
        $region51: #{tpu_custom_call.1} parent=23 // pred_region
          %p455 = scmp.lt.s32.totalorder %s30, 1
          %s456 = scalar_select %p455, %s30, 1
          %s457 = scalar_lea.vmem %s7, %s456
        $region52: #{tpu_custom_call.1} parent=23 // pred_fallthru
          _
        // Predicated region
        $region53: #{tpu_custom_call.1} parent=23 // pred_check
          %p458 = pneg %p270
        $region54: #{tpu_custom_call.1} parent=23 // pred_check_branch
          %460 = sbr.rel (%p458) target = $region56
        $region55: #{tpu_custom_call.1} parent=23 // pred_region
          %p461 = scmp.lt.s32.totalorder %s30, 1
          %s462 = scalar_select %p461, %s30, 1
          %s463 = smul.addr %s462, 4
          %s464 = smul.addr %s463, 8
          %s465 = scalar_lea.vmem %s8, %s464
        $region56: #{tpu_custom_call.1} parent=23 // pred_fallthru
          _
        // Predicated region
        $region57: #{tpu_custom_call.1} parent=23 // pred_check
          %p466 = pneg %p296
        $region58: #{tpu_custom_call.1} parent=23 // pred_check_branch
          %468 = sbr.rel (%p466) target = $region60
        $region59: #{tpu_custom_call.1} parent=23 // pred_region
          %p469 = scmp.lt.s32.totalorder %s30, 1
          %s470 = scalar_select %p469, %s30, 1
          %s471 = scalar_lea.vmem %s9, %s470
        $region60: #{tpu_custom_call.1} parent=23 // pred_fallthru
          _
        // Predicated region
        $region61: #{tpu_custom_call.1} parent=23 // pred_check
          %p472 = pneg %p322
        $region62: #{tpu_custom_call.1} parent=23 // pred_check_branch
          %474 = sbr.rel (%p472) target = $region64
        $region63: #{tpu_custom_call.1} parent=23 // pred_region
          %p475 = scmp.lt.s32.totalorder %s30, 1
          %s476 = scalar_select %p475, %s30, 1
          %s477 = smul.addr %s476, 2
          %s478 = smul.addr %s477, 8
          %s479 = scalar_lea.vmem %s10, %s478
        $region64: #{tpu_custom_call.1} parent=23 // pred_fallthru
          _
      $region24: #{tpu_custom_call.1} parent=5 // pred_fallthru
        _
      %p480 = scmp.le.s32.totalorder 1, %s21
      %p481 = scmp.lt.s32.totalorder %s21, 5
      %p482 = pnand %p480, %p481
      %p483 = pneg %p482
      // Predicated region
      $region65: #{tpu_custom_call.1} parent=5 // pred_check
        _
      $region66: #{tpu_custom_call.1} parent=5 // pred_check_branch
        %485 = sbr.rel (%p482) target = $region68
      $region67: #{tpu_custom_call.1} parent=5 // pred_region
        %s486 = ssub.s32 %s21, 1
        %p487 = scmp.lt.s32.totalorder %s31, 1
        %s488 = scalar_select %p487, %s31, 1
        %p489 = scmp.lt.s32.totalorder %s32, 0
        %s490 = scalar_select %p489, %s32, 0
        %s491 = sadd.s32 %s490, %s488
        %s492 = smul.addr %s491, 8
        %s493 = scalar_lea.vmem %s0, %s492
        %p494 = pneg %p68
        %p495 = pneg %p65
        %p496 = scmp.lt.s32.totalorder %s31, 1
        %s497 = scalar_select %p496, %s31, 1
        %s498 = smul.addr %s497, 8
        %s499 = scalar_lea.vmem %s1, %s498
        %p500 = pneg %p94
        %p501 = pneg %p91
        %p502 = scmp.lt.s32.totalorder %s31, 1
        %s503 = scalar_select %p502, %s31, 1
        %s504 = smul.addr %s503, 8
        %s505 = scalar_lea.vmem %s2, %s504
        %p506 = pneg %p120
        %p507 = pneg %p117
        %p508 = scmp.lt.s32.totalorder %s32, 0
        %s509 = scalar_select %p508, %s32, 0
        %s510 = smul.addr %s509, 8
        %s511 = scalar_lea.vmem %s3, %s510
        %p512 = pneg %p146
        %p513 = pneg %p143
        %p514 = scmp.lt.s32.totalorder %s33, 1
        %s515 = scalar_select %p514, %s33, 1
        %s516 = smul.addr %s515, 4
        %s517 = smul.addr %s516, 8
        %s518 = scalar_lea.vmem %s4, %s517
        %p519 = pneg %p172
        %p520 = pneg %p169
        %p521 = scmp.lt.s32.totalorder %s33, 1
        %s522 = scalar_select %p521, %s33, 1
        %s523 = scalar_lea.vmem %s5, %s522
        %p524 = pneg %p198
        %p525 = pneg %p195
        %p526 = scmp.lt.s32.totalorder %s33, 1
        %s527 = scalar_select %p526, %s33, 1
        %s528 = smul.addr %s527, 4
        %s529 = smul.addr %s528, 8
        %s530 = scalar_lea.vmem %s6, %s529
        %p531 = pneg %p224
        %p532 = pneg %p221
        %p533 = scmp.lt.s32.totalorder %s33, 1
        %s534 = scalar_select %p533, %s33, 1
        %s535 = scalar_lea.vmem %s7, %s534
        %p536 = pneg %p250
        %p537 = pneg %p247
        %p538 = scmp.lt.s32.totalorder %s33, 1
        %s539 = scalar_select %p538, %s33, 1
        %s540 = smul.addr %s539, 4
        %s541 = smul.addr %s540, 8
        %s542 = scalar_lea.vmem %s8, %s541
        %p543 = pneg %p276
        %p544 = pneg %p273
        %p545 = scmp.lt.s32.totalorder %s33, 1
        %s546 = scalar_select %p545, %s33, 1
        %s547 = scalar_lea.vmem %s9, %s546
        %p548 = pneg %p302
        %p549 = pneg %p299
        %p550 = scmp.lt.s32.totalorder %s33, 1
        %s551 = scalar_select %p550, %s33, 1
        %s552 = smul.addr %s551, 2
        %s553 = smul.addr %s552, 8
        %s554 = scalar_lea.vmem %s10, %s553
        %p555 = pneg %p328
        %p556 = pneg %p325
        %p557 = pneg %p349
        %p558 = pneg %p346
        %p559 = pneg %p377
        %p560 = pneg %p374
        %s561 = sand.u32 %s364, 1
        %s562 = scalar_lea.sflag [#allocation4], %s561
        %s563 = sand.u32 %s364, 1
        %s564 = smul.addr %s563, 8
        %s565 = scalar_lea.vmem [#allocation3], %s564
        %p566 = scmp.lt.s32.totalorder %s31, 1
        %s567 = scalar_select %p566, %s31, 1
        %p568 = scmp.lt.s32.totalorder %s32, 0
        %s569 = scalar_select %p568, %s32, 0
        %s570 = sadd.s32 %s569, %s567
        %s571 = smul.addr %s570, 8
        %s572 = scalar_lea.vmem %s0, %s571
        %p573 = scmp.lt.s32.totalorder %s31, 1
        %s574 = scalar_select %p573, %s31, 1
        %s575 = smul.addr %s574, 8
        %s576 = scalar_lea.vmem %s1, %s575
        %p577 = scmp.lt.s32.totalorder %s31, 1
        %s578 = scalar_select %p577, %s31, 1
        %s579 = smul.addr %s578, 8
        %s580 = scalar_lea.vmem %s2, %s579
        %p581 = scmp.lt.s32.totalorder %s32, 0
        %s582 = scalar_select %p581, %s32, 0
        %s583 = smul.addr %s582, 8
        %s584 = scalar_lea.vmem %s3, %s583
        %p585 = scmp.lt.s32.totalorder %s33, 1
        %s586 = scalar_select %p585, %s33, 1
        %s587 = smul.addr %s586, 4
        %s588 = smul.addr %s587, 8
        %s589 = scalar_lea.vmem %s4, %s588
        %p590 = scmp.lt.s32.totalorder %s33, 1
        %s591 = scalar_select %p590, %s33, 1
        %s592 = scalar_lea.vmem %s5, %s591
        %p593 = scmp.lt.s32.totalorder %s33, 1
        %s594 = scalar_select %p593, %s33, 1
        %s595 = smul.addr %s594, 4
        %s596 = smul.addr %s595, 8
        %s597 = scalar_lea.vmem %s6, %s596
        %p598 = scmp.lt.s32.totalorder %s33, 1
        %s599 = scalar_select %p598, %s33, 1
        %s600 = scalar_lea.vmem %s7, %s599
        %p601 = scmp.lt.s32.totalorder %s33, 1
        %s602 = scalar_select %p601, %s33, 1
        %s603 = smul.addr %s602, 4
        %s604 = smul.addr %s603, 8
        %s605 = scalar_lea.vmem %s8, %s604
        %p606 = scmp.lt.s32.totalorder %s33, 1
        %s607 = scalar_select %p606, %s33, 1
        %s608 = scalar_lea.vmem %s9, %s607
        %p609 = scmp.lt.s32.totalorder %s33, 1
        %s610 = scalar_select %p609, %s33, 1
        %s611 = smul.addr %s610, 2
        %s612 = smul.addr %s611, 8
        %s613 = scalar_lea.vmem %s10, %s612
        %p614 = scmp.eq.s32.totalorder %s33, 0
        // Predicated region
        $region69: #{tpu_custom_call.1} parent=67 // pred_check
          %p615 = pneg %p614
        $region70: #{tpu_custom_call.1} parent=67 // pred_check_branch
          %617 = sbr.rel (%p615) target = $region72
        $region71: #{tpu_custom_call.1} parent=67 // pred_region
          %vm618 = vcmask 261120
          %619 = vst.msk [vmem:[#allocation2] sm:$0xff] %vm618, 0.0
        $region72: #{tpu_custom_call.1} parent=67 // pred_fallthru
          _
        %v620 = vld [vmem:[%s572] sm:$0xff]
        %v621 = vld [vmem:[%s576] sm:$0xff]
        %v622 = vld [vmem:[%s580] sm:$0xff]
        %v623 = vld [vmem:[%s589] sm:$0xff]
        %v624 = vld [vmem:[%s589 + $0x8] sm:$0xff]
        %v625 = vld [vmem:[%s589 + $0x10] sm:$0xff]
        %v626 = vld [vmem:[%s589 + $0x18] sm:$0xff]
        %v627 = vld [vmem:[%s592] sm:$0x1]
        %v629 = vlaneseq
        %v630 = vshrl.u32 %v629, 7
        %v631 = vsub.s32 0, %v630
        %v632 = vrot.slane %v627, %v631
        %vm634 = vcmask 261120
        %v636 = vsel %vm634, %v620, 0
        %638 = vmatprep.subr.mxu0 0.0
        %639 = vmatpush1.msra.mxu0 %v623
        %640 = vmatprep.subr.mxu0 0.0
        %641 = vmatpush1.msra.mxu0 %v624
        %642 = vmatprep.subr.mxu0 0.0
        %643 = vmatpush1.msra.mxu0 %v625
        %644 = vmatprep.subr.mxu0 0.0
        %645 = vmatpush1.msra.mxu0 %v626
        %646 = vmatprep.subr.mxu0 0.0
        %647 = vmatpush1.msra.mxu0 0.0
        %648 = vmatprep.subr.mxu0 0.0
        %649 = vmatpush1.msra.mxu0 0.0
        %650 = vmatprep.subr.mxu0 0.0
        %651 = vmatpush1.msra.mxu0 0.0
        %652 = vmatprep.subr.mxu0 0.0
        %653 = vmatpush1.msra.mxu0 0.0
        %654 = vmatprep.subr.mxu0 0.0
        %655 = vmatpush1.msra.mxu0 0.0
        %656 = vmatprep.subr.mxu0 0.0
        %657 = vmatpush1.msra.mxu0 0.0
        %658 = vmatprep.subr.mxu0 0.0
        %659 = vmatpush1.msra.mxu0 0.0
        %660 = vmatprep.subr.mxu0 0.0
        %661 = vmatpush1.msra.mxu0 0.0
        %662 = vmatprep.subr.mxu0 0.0
        %663 = vmatpush1.msra.mxu0 0.0
        %664 = vmatprep.subr.mxu0 0.0
        %665 = vmatpush1.msra.mxu0 0.0
        %666 = vmatprep.subr.mxu0 0.0
        %667 = vmatpush1.msra.mxu0 0.0
        %668 = vmatprep.subr.mxu0 0.0
        %669 = vmatpush1.msra.mxu0 0.0
        %670 = vmatprep.subr.mxu0 0.0
        %671 = vmatpush1.msra.mxu0 0.0
        %672 = vmatprep.subr.mxu0 0.0
        %673 = vmatpush1.msra.mxu0 0.0
        %674 = vmatprep.subr.mxu0 0.0
        %675 = vmatpush1.msra.mxu0 0.0
        %676 = vmatprep.subr.mxu0 0.0
        %677 = vmatpush1.msra.mxu0 0.0
        %678 = vmatprep.subr.mxu0 0.0
        %679 = vmatpush1.msra.mxu0 0.0
        %680 = vmatprep.subr.mxu0 0.0
        %681 = vmatpush1.msra.mxu0 0.0
        %682 = vmatprep.subr.mxu0 0.0
        %683 = vmatpush1.msra.mxu0 0.0
        %684 = vmatprep.subr.mxu0 0.0
        %685 = vmatpush1.msra.mxu0 0.0
        %686 = vmatprep.subr.mxu0 0.0
        %687 = vmatpush1.msra.mxu0 0.0
        %688 = vmatprep.subr.mxu0 0.0
        %689 = vmatpush1.msra.mxu0 0.0
        %690 = vmatprep.subr.mxu0 0.0
        %691 = vmatpush1.msra.mxu0 0.0
        %692 = vmatprep.subr.mxu0 0.0
        %693 = vmatpush1.msra.mxu0 0.0
        %694 = vmatprep.subr.mxu0 0.0
        %695 = vmatpush1.msra.mxu0 0.0
        %696 = vmatprep.subr.mxu0 0.0
        %697 = vmatpush1.msra.mxu0 0.0
        %698 = vmatprep.subr.mxu0 0.0
        %699 = vmatpush1.msra.mxu0 0.0
        %700 = vmatprep.subr.mxu0 0.0
        %701 = vmatpush1.msra.mxu0 0.0
        %702 = vmatprep.mubr.f32.mxu0 0.0
        %703 = vmatmul.mubr.f32.gmra.mrb[0].mxu0 %v636
        %v704 = vpop.f32.mrb[0].mxu0
        %v705 = vadd.f32 %v632, %v704
        %v706 = vpop.f32.mrb[0].mxu0
        %707 = vdwg.mxu0
        %v708 = vld [vmem:[%s597] sm:$0xff]
        %v709 = vld [vmem:[%s597 + $0x8] sm:$0xff]
        %v710 = vld [vmem:[%s597 + $0x10] sm:$0xff]
        %v711 = vld [vmem:[%s597 + $0x18] sm:$0xff]
        %v712 = vld [vmem:[%s600] sm:$0x1]
        %v714 = vlaneseq
        %v715 = vshrl.u32 %v714, 7
        %v716 = vsub.s32 0, %v715
        %v717 = vrot.slane %v712, %v716
        %v720 = vsel %vm634, %v621, 0
        %722 = vmatprep.subr.mxu0 0.0
        %723 = vmatpush1.msra.mxu0 %v708
        %724 = vmatprep.subr.mxu0 0.0
        %725 = vmatpush1.msra.mxu0 %v709
        %726 = vmatprep.subr.mxu0 0.0
        %727 = vmatpush1.msra.mxu0 %v710
        %728 = vmatprep.subr.mxu0 0.0
        %729 = vmatpush1.msra.mxu0 %v711
        %730 = vmatprep.subr.mxu0 0.0
        %731 = vmatpush1.msra.mxu0 0.0
        %732 = vmatprep.subr.mxu0 0.0
        %733 = vmatpush1.msra.mxu0 0.0
        %734 = vmatprep.subr.mxu0 0.0
        %735 = vmatpush1.msra.mxu0 0.0
        %736 = vmatprep.subr.mxu0 0.0
        %737 = vmatpush1.msra.mxu0 0.0
        %738 = vmatprep.subr.mxu0 0.0
        %739 = vmatpush1.msra.mxu0 0.0
        %740 = vmatprep.subr.mxu0 0.0
        %741 = vmatpush1.msra.mxu0 0.0
        %742 = vmatprep.subr.mxu0 0.0
        %743 = vmatpush1.msra.mxu0 0.0
        %744 = vmatprep.subr.mxu0 0.0
        %745 = vmatpush1.msra.mxu0 0.0
        %746 = vmatprep.subr.mxu0 0.0
        %747 = vmatpush1.msra.mxu0 0.0
        %748 = vmatprep.subr.mxu0 0.0
        %749 = vmatpush1.msra.mxu0 0.0
        %750 = vmatprep.subr.mxu0 0.0
        %751 = vmatpush1.msra.mxu0 0.0
        %752 = vmatprep.subr.mxu0 0.0
        %753 = vmatpush1.msra.mxu0 0.0
        %754 = vmatprep.subr.mxu0 0.0
        %755 = vmatpush1.msra.mxu0 0.0
        %756 = vmatprep.subr.mxu0 0.0
        %757 = vmatpush1.msra.mxu0 0.0
        %758 = vmatprep.subr.mxu0 0.0
        %759 = vmatpush1.msra.mxu0 0.0
        %760 = vmatprep.subr.mxu0 0.0
        %761 = vmatpush1.msra.mxu0 0.0
        %762 = vmatprep.subr.mxu0 0.0
        %763 = vmatpush1.msra.mxu0 0.0
        %764 = vmatprep.subr.mxu0 0.0
        %765 = vmatpush1.msra.mxu0 0.0
        %766 = vmatprep.subr.mxu0 0.0
        %767 = vmatpush1.msra.mxu0 0.0
        %768 = vmatprep.subr.mxu0 0.0
        %769 = vmatpush1.msra.mxu0 0.0
        %770 = vmatprep.subr.mxu0 0.0
        %771 = vmatpush1.msra.mxu0 0.0
        %772 = vmatprep.subr.mxu0 0.0
        %773 = vmatpush1.msra.mxu0 0.0
        %774 = vmatprep.subr.mxu0 0.0
        %775 = vmatpush1.msra.mxu0 0.0
        %776 = vmatprep.subr.mxu0 0.0
        %777 = vmatpush1.msra.mxu0 0.0
        %778 = vmatprep.subr.mxu0 0.0
        %779 = vmatpush1.msra.mxu0 0.0
        %780 = vmatprep.subr.mxu0 0.0
        %781 = vmatpush1.msra.mxu0 0.0
        %782 = vmatprep.subr.mxu0 0.0
        %783 = vmatpush1.msra.mxu0 0.0
        %784 = vmatprep.subr.mxu0 0.0
        %785 = vmatpush1.msra.mxu0 0.0
        %786 = vmatprep.mubr.f32.mxu0 0.0
        %787 = vmatmul.mubr.f32.gmra.mrb[0].mxu0 %v720
        %v788 = vpop.f32.mrb[0].mxu0
        %v789 = vadd.f32 %v717, %v788
        %v790 = vpop.f32.mrb[0].mxu0
        %791 = vdwg.mxu0
        %v792 = vld [vmem:[%s605] sm:$0xff]
        %v793 = vld [vmem:[%s605 + $0x8] sm:$0xff]
        %v794 = vld [vmem:[%s605 + $0x10] sm:$0xff]
        %v795 = vld [vmem:[%s605 + $0x18] sm:$0xff]
        %v796 = vld [vmem:[%s608] sm:$0x1]
        %v798 = vlaneseq
        %v799 = vshrl.u32 %v798, 7
        %v800 = vsub.s32 0, %v799
        %v801 = vrot.slane %v796, %v800
        %v804 = vsel %vm634, %v622, 0
        %806 = vmatprep.subr.mxu0 0.0
        %807 = vmatpush1.msra.mxu0 %v792
        %808 = vmatprep.subr.mxu0 0.0
        %809 = vmatpush1.msra.mxu0 %v793
        %810 = vmatprep.subr.mxu0 0.0
        %811 = vmatpush1.msra.mxu0 %v794
        %812 = vmatprep.subr.mxu0 0.0
        %813 = vmatpush1.msra.mxu0 %v795
        %814 = vmatprep.subr.mxu0 0.0
        %815 = vmatpush1.msra.mxu0 0.0
        %816 = vmatprep.subr.mxu0 0.0
        %817 = vmatpush1.msra.mxu0 0.0
        %818 = vmatprep.subr.mxu0 0.0
        %819 = vmatpush1.msra.mxu0 0.0
        %820 = vmatprep.subr.mxu0 0.0
        %821 = vmatpush1.msra.mxu0 0.0
        %822 = vmatprep.subr.mxu0 0.0
        %823 = vmatpush1.msra.mxu0 0.0
        %824 = vmatprep.subr.mxu0 0.0
        %825 = vmatpush1.msra.mxu0 0.0
        %826 = vmatprep.subr.mxu0 0.0
        %827 = vmatpush1.msra.mxu0 0.0
        %828 = vmatprep.subr.mxu0 0.0
        %829 = vmatpush1.msra.mxu0 0.0
        %830 = vmatprep.subr.mxu0 0.0
        %831 = vmatpush1.msra.mxu0 0.0
        %832 = vmatprep.subr.mxu0 0.0
        %833 = vmatpush1.msra.mxu0 0.0
        %834 = vmatprep.subr.mxu0 0.0
        %835 = vmatpush1.msra.mxu0 0.0
        %836 = vmatprep.subr.mxu0 0.0
        %837 = vmatpush1.msra.mxu0 0.0
        %838 = vmatprep.subr.mxu0 0.0
        %839 = vmatpush1.msra.mxu0 0.0
        %840 = vmatprep.subr.mxu0 0.0
        %841 = vmatpush1.msra.mxu0 0.0
        %842 = vmatprep.subr.mxu0 0.0
        %843 = vmatpush1.msra.mxu0 0.0
        %844 = vmatprep.subr.mxu0 0.0
        %845 = vmatpush1.msra.mxu0 0.0
        %846 = vmatprep.subr.mxu0 0.0
        %847 = vmatpush1.msra.mxu0 0.0
        %848 = vmatprep.subr.mxu0 0.0
        %849 = vmatpush1.msra.mxu0 0.0
        %850 = vmatprep.subr.mxu0 0.0
        %851 = vmatpush1.msra.mxu0 0.0
        %852 = vmatprep.subr.mxu0 0.0
        %853 = vmatpush1.msra.mxu0 0.0
        %854 = vmatprep.subr.mxu0 0.0
        %855 = vmatpush1.msra.mxu0 0.0
        %856 = vmatprep.subr.mxu0 0.0
        %857 = vmatpush1.msra.mxu0 0.0
        %858 = vmatprep.subr.mxu0 0.0
        %859 = vmatpush1.msra.mxu0 0.0
        %860 = vmatprep.subr.mxu0 0.0
        %861 = vmatpush1.msra.mxu0 0.0
        %862 = vmatprep.subr.mxu0 0.0
        %863 = vmatpush1.msra.mxu0 0.0
        %864 = vmatprep.subr.mxu0 0.0
        %865 = vmatpush1.msra.mxu0 0.0
        %866 = vmatprep.subr.mxu0 0.0
        %867 = vmatpush1.msra.mxu0 0.0
        %868 = vmatprep.subr.mxu0 0.0
        %869 = vmatpush1.msra.mxu0 0.0
        %870 = vmatprep.mubr.f32.mxu0 0.0
        %871 = vmatmul.mubr.f32.gmra.mrb[0].mxu0 %v804
        %v872 = vpop.f32.mrb[0].mxu0
        %v873 = vadd.f32 %v801, %v872
        %v874 = vpop.f32.mrb[0].mxu0
        %875 = vdwg.mxu0
        %v876 = vld [vmem:[%s584] sm:$0xff]
        %vm877 = vcmask 130048
        %v879 = vsel %vm877, %v705, 0
        %v882 = vsel %vm877, %v789, 0
        %884 = vmatprep.subr.mxu0 0.0
        %885 = vmatpush1.xpose.msra.mxu0 %v882
        %886 = vmatprep.subr.mxu0 0.0
        %887 = vmatpush1.xpose.msra.mxu0 0.0
        %888 = vmatprep.subr.mxu0 0.0
        %889 = vmatpush1.xpose.msra.mxu0 0.0
        %890 = vmatprep.subr.mxu0 0.0
        %891 = vmatpush1.xpose.msra.mxu0 0.0
        %892 = vmatprep.subr.mxu0 0.0
        %893 = vmatpush1.xpose.msra.mxu0 0.0
        %894 = vmatprep.subr.mxu0 0.0
        %895 = vmatpush1.xpose.msra.mxu0 0.0
        %896 = vmatprep.subr.mxu0 0.0
        %897 = vmatpush1.xpose.msra.mxu0 0.0
        %898 = vmatprep.subr.mxu0 0.0
        %899 = vmatpush1.xpose.msra.mxu0 0.0
        %900 = vmatprep.subr.mxu0 0.0
        %901 = vmatpush1.xpose.msra.mxu0 0.0
        %902 = vmatprep.subr.mxu0 0.0
        %903 = vmatpush1.xpose.msra.mxu0 0.0
        %904 = vmatprep.subr.mxu0 0.0
        %905 = vmatpush1.xpose.msra.mxu0 0.0
        %906 = vmatprep.subr.mxu0 0.0
        %907 = vmatpush1.xpose.msra.mxu0 0.0
        %908 = vmatprep.subr.mxu0 0.0
        %909 = vmatpush1.xpose.msra.mxu0 0.0
        %910 = vmatprep.subr.mxu0 0.0
        %911 = vmatpush1.xpose.msra.mxu0 0.0
        %912 = vmatprep.subr.mxu0 0.0
        %913 = vmatpush1.xpose.msra.mxu0 0.0
        %914 = vmatprep.subr.mxu0 0.0
        %915 = vmatpush1.xpose.msra.mxu0 0.0
        %916 = vmatprep.subr.mxu0 0.0
        %917 = vmatpush1.xpose.msra.mxu0 0.0
        %918 = vmatprep.subr.mxu0 0.0
        %919 = vmatpush1.xpose.msra.mxu0 0.0
        %920 = vmatprep.subr.mxu0 0.0
        %921 = vmatpush1.xpose.msra.mxu0 0.0
        %922 = vmatprep.subr.mxu0 0.0
        %923 = vmatpush1.xpose.msra.mxu0 0.0
        %924 = vmatprep.subr.mxu0 0.0
        %925 = vmatpush1.xpose.msra.mxu0 0.0
        %926 = vmatprep.subr.mxu0 0.0
        %927 = vmatpush1.xpose.msra.mxu0 0.0
        %928 = vmatprep.subr.mxu0 0.0
        %929 = vmatpush1.xpose.msra.mxu0 0.0
        %930 = vmatprep.subr.mxu0 0.0
        %931 = vmatpush1.xpose.msra.mxu0 0.0
        %932 = vmatprep.subr.mxu0 0.0
        %933 = vmatpush1.xpose.msra.mxu0 0.0
        %934 = vmatprep.subr.mxu0 0.0
        %935 = vmatpush1.xpose.msra.mxu0 0.0
        %936 = vmatprep.subr.mxu0 0.0
        %937 = vmatpush1.xpose.msra.mxu0 0.0
        %938 = vmatprep.subr.mxu0 0.0
        %939 = vmatpush1.xpose.msra.mxu0 0.0
        %940 = vmatprep.subr.mxu0 0.0
        %941 = vmatpush1.xpose.msra.mxu0 0.0
        %942 = vmatprep.subr.mxu0 0.0
        %943 = vmatpush1.xpose.msra.mxu0 0.0
        %944 = vmatprep.subr.mxu0 0.0
        %945 = vmatpush1.xpose.msra.mxu0 0.0
        %946 = vmatprep.subr.mxu0 0.0
        %947 = vmatpush1.xpose.msra.mxu0 0.0
        %948 = vmatprep.mubr.f32.mxu0 0.0
        %949 = vmatmul.mubr.f32.gmra.mrb[0].mxu0 %v879
        %v950 = vpop.f32.mrb[0].mxu0
        %v951 = vadd.f32 %v876, %v950
        %v952 = vpop.f32.mrb[0].mxu0
        %953 = vdwg.mxu0
        %vm954 = vcmask 64512
        %v955 = vsel %vm954, %v951, -inf
        %956 = vmax.xlane.f32.xlu0 %v955
        %v957 = vpop.xlane.xlu0 %956
        %v958 = vsub.f32 %v951, %v957
        %v959 = vmul.f32 %v958, 1.442695
        %v960 = vpow.pop %v959
        %v961 = vsel %vm954, %v960, 0.0
        %962 = vadd.xlane.f32.xlu0 %v961
        %v963 = vpop.xlane.xlu0 %962
        %v964 = vrcp.pop %v963
        %v965 = vmul.f32 %v960, %v964
        %v967 = vsel %vm954, %v965, 0
        %969 = vmatprep.subr.mxu0 0.0
        %970 = vmatpush1.msra.mxu0 %v873
        %971 = vmatprep.subr.mxu0 0.0
        %972 = vmatpush1.msra.mxu0 0.0
        %973 = vmatprep.subr.mxu0 0.0
        %974 = vmatpush1.msra.mxu0 0.0
        %975 = vmatprep.subr.mxu0 0.0
        %976 = vmatpush1.msra.mxu0 0.0
        %977 = vmatprep.subr.mxu0 0.0
        %978 = vmatpush1.msra.mxu0 0.0
        %979 = vmatprep.subr.mxu0 0.0
        %980 = vmatpush1.msra.mxu0 0.0
        %981 = vmatprep.subr.mxu0 0.0
        %982 = vmatpush1.msra.mxu0 0.0
        %983 = vmatprep.subr.mxu0 0.0
        %984 = vmatpush1.msra.mxu0 0.0
        %985 = vmatprep.subr.mxu0 0.0
        %986 = vmatpush1.msra.mxu0 0.0
        %987 = vmatprep.subr.mxu0 0.0
        %988 = vmatpush1.msra.mxu0 0.0
        %989 = vmatprep.subr.mxu0 0.0
        %990 = vmatpush1.msra.mxu0 0.0
        %991 = vmatprep.subr.mxu0 0.0
        %992 = vmatpush1.msra.mxu0 0.0
        %993 = vmatprep.subr.mxu0 0.0
        %994 = vmatpush1.msra.mxu0 0.0
        %995 = vmatprep.subr.mxu0 0.0
        %996 = vmatpush1.msra.mxu0 0.0
        %997 = vmatprep.subr.mxu0 0.0
        %998 = vmatpush1.msra.mxu0 0.0
        %999 = vmatprep.subr.mxu0 0.0
        %1000 = vmatpush1.msra.mxu0 0.0
        %1001 = vmatprep.subr.mxu0 0.0
        %1002 = vmatpush1.msra.mxu0 0.0
        %1003 = vmatprep.subr.mxu0 0.0
        %1004 = vmatpush1.msra.mxu0 0.0
        %1005 = vmatprep.subr.mxu0 0.0
        %1006 = vmatpush1.msra.mxu0 0.0
        %1007 = vmatprep.subr.mxu0 0.0
        %1008 = vmatpush1.msra.mxu0 0.0
        %1009 = vmatprep.subr.mxu0 0.0
        %1010 = vmatpush1.msra.mxu0 0.0
        %1011 = vmatprep.subr.mxu0 0.0
        %1012 = vmatpush1.msra.mxu0 0.0
        %1013 = vmatprep.subr.mxu0 0.0
        %1014 = vmatpush1.msra.mxu0 0.0
        %1015 = vmatprep.subr.mxu0 0.0
        %1016 = vmatpush1.msra.mxu0 0.0
        %1017 = vmatprep.subr.mxu0 0.0
        %1018 = vmatpush1.msra.mxu0 0.0
        %1019 = vmatprep.subr.mxu0 0.0
        %1020 = vmatpush1.msra.mxu0 0.0
        %1021 = vmatprep.subr.mxu0 0.0
        %1022 = vmatpush1.msra.mxu0 0.0
        %1023 = vmatprep.subr.mxu0 0.0
        %1024 = vmatpush1.msra.mxu0 0.0
        %1025 = vmatprep.subr.mxu0 0.0
        %1026 = vmatpush1.msra.mxu0 0.0
        %1027 = vmatprep.subr.mxu0 0.0
        %1028 = vmatpush1.msra.mxu0 0.0
        %1029 = vmatprep.subr.mxu0 0.0
        %1030 = vmatpush1.msra.mxu0 0.0
        %1031 = vmatprep.subr.mxu0 0.0
        %1032 = vmatpush1.msra.mxu0 0.0
        %1033 = vmatprep.mubr.f32.mxu0 0.0
        %1034 = vmatmul.mubr.f32.gmra.mrb[0].mxu0 %v967
        %v1035 = vpop.f32.mrb[0].mxu0
        %v1036 = vadd.f32 0.0, %v1035
        %v1037 = vpop.f32.mrb[0].mxu0
        %1038 = vdwg.mxu0
        %v1039 = vld [vmem:[#allocation2] sm:$0xff]
        %v1040 = vld [vmem:[%s613] sm:$0xff]
        %v1041 = vld [vmem:[%s613 + $0x8] sm:$0xff]
        %v1043 = vsel %vm877, %v1036, 0
        %1045 = vmatprep.subr.mxu0 0.0
        %1046 = vmatpush1.msra.mxu0 %v1040
        %1047 = vmatprep.subr.mxu0 0.0
        %1048 = vmatpush1.msra.mxu0 %v1041
        %1049 = vmatprep.subr.mxu0 0.0
        %1050 = vmatpush1.msra.mxu0 0.0
        %1051 = vmatprep.subr.mxu0 0.0
        %1052 = vmatpush1.msra.mxu0 0.0
        %1053 = vmatprep.subr.mxu0 0.0
        %1054 = vmatpush1.msra.mxu0 0.0
        %1055 = vmatprep.subr.mxu0 0.0
        %1056 = vmatpush1.msra.mxu0 0.0
        %1057 = vmatprep.subr.mxu0 0.0
        %1058 = vmatpush1.msra.mxu0 0.0
        %1059 = vmatprep.subr.mxu0 0.0
        %1060 = vmatpush1.msra.mxu0 0.0
        %1061 = vmatprep.subr.mxu0 0.0
        %1062 = vmatpush1.msra.mxu0 0.0
        %1063 = vmatprep.subr.mxu0 0.0
        %1064 = vmatpush1.msra.mxu0 0.0
        %1065 = vmatprep.subr.mxu0 0.0
        %1066 = vmatpush1.msra.mxu0 0.0
        %1067 = vmatprep.subr.mxu0 0.0
        %1068 = vmatpush1.msra.mxu0 0.0
        %1069 = vmatprep.subr.mxu0 0.0
        %1070 = vmatpush1.msra.mxu0 0.0
        %1071 = vmatprep.subr.mxu0 0.0
        %1072 = vmatpush1.msra.mxu0 0.0
        %1073 = vmatprep.subr.mxu0 0.0
        %1074 = vmatpush1.msra.mxu0 0.0
        %1075 = vmatprep.subr.mxu0 0.0
        %1076 = vmatpush1.msra.mxu0 0.0
        %1077 = vmatprep.subr.mxu0 0.0
        %1078 = vmatpush1.msra.mxu0 0.0
        %1079 = vmatprep.subr.mxu0 0.0
        %1080 = vmatpush1.msra.mxu0 0.0
        %1081 = vmatprep.subr.mxu0 0.0
        %1082 = vmatpush1.msra.mxu0 0.0
        %1083 = vmatprep.subr.mxu0 0.0
        %1084 = vmatpush1.msra.mxu0 0.0
        %1085 = vmatprep.subr.mxu0 0.0
        %1086 = vmatpush1.msra.mxu0 0.0
        %1087 = vmatprep.subr.mxu0 0.0
        %1088 = vmatpush1.msra.mxu0 0.0
        %1089 = vmatprep.subr.mxu0 0.0
        %1090 = vmatpush1.msra.mxu0 0.0
        %1091 = vmatprep.subr.mxu0 0.0
        %1092 = vmatpush1.msra.mxu0 0.0
        %1093 = vmatprep.subr.mxu0 0.0
        %1094 = vmatpush1.msra.mxu0 0.0
        %1095 = vmatprep.subr.mxu0 0.0
        %1096 = vmatpush1.msra.mxu0 0.0
        %1097 = vmatprep.subr.mxu0 0.0
        %1098 = vmatpush1.msra.mxu0 0.0
        %1099 = vmatprep.subr.mxu0 0.0
        %1100 = vmatpush1.msra.mxu0 0.0
        %1101 = vmatprep.subr.mxu0 0.0
        %1102 = vmatpush1.msra.mxu0 0.0
        %1103 = vmatprep.subr.mxu0 0.0
        %1104 = vmatpush1.msra.mxu0 0.0
        %1105 = vmatprep.subr.mxu0 0.0
        %1106 = vmatpush1.msra.mxu0 0.0
        %1107 = vmatprep.subr.mxu0 0.0
        %1108 = vmatpush1.msra.mxu0 0.0
        %1109 = vmatprep.mubr.f32.mxu0 0.0
        %1110 = vmatmul.mubr.f32.gmra.mrb[0].mxu0 %v1043
        %v1111 = vpop.f32.mrb[0].mxu0
        %v1112 = vadd.f32 0.0, %v1111
        %v1113 = vpop.f32.mrb[0].mxu0
        %1114 = vdwg.mxu0
        %v1115 = vadd.f32 %v1039, %v1112
        %1116 = vst.msk [vmem:[#allocation2] sm:$0xff] %vm634, %v1115
        %p1117 = scmp.eq.s32.totalorder %s33, 1
        // Predicated region
        $region73: #{tpu_custom_call.1} parent=67 // pred_check
          %p1118 = pneg %p1117
        $region74: #{tpu_custom_call.1} parent=67 // pred_check_branch
          %1120 = sbr.rel (%p1118) target = $region76
        $region75: #{tpu_custom_call.1} parent=67 // pred_region
          %v1121 = vld [vmem:[#allocation2] sm:$0xff]
          %v1122 = vld [vmem:[%s11] sm:$0x1]
          %v1124 = vlaneseq
          %v1125 = vshrl.u32 %v1124, 7
          %v1126 = vsub.s32 0, %v1125
          %v1127 = vrot.slane %v1122, %v1126
          %v1129 = vadd.f32 %v1121, %v1127
          %1130 = vst.msk [vmem:[%s565] sm:$0xff] %vm634, %v1129
        $region76: #{tpu_custom_call.1} parent=67 // pred_fallthru
          _
        %s1131 = sand.u32 %s364, 1
        %s1132 = scalar_lea.sflag [#allocation4], %s1131
        %s1133 = sand.u32 %s364, 1
        %s1134 = smul.addr %s1133, 8
        %s1135 = scalar_lea.vmem [#allocation3], %s1134
        // Predicated region
        $region77: #{tpu_custom_call.1} parent=67 // pred_check
          %p1136 = pneg %p374
        $region78: #{tpu_custom_call.1} parent=67 // pred_check_branch
          %1138 = sbr.rel (%p1136) target = $region80
        $region79: #{tpu_custom_call.1} parent=67 // pred_region
          %s1140 = ssub.s32 128, 128
          %1141 = vsyncadd %s1132, %s1140
          %s1142 = sadd.s32 %s32, %s31
          %s1143 = smul.addr %s1142, 128
          %s1144 = scalar_lea.hbm %s12, %s1143
          %s1146 = sshll.u32 %s1135, 4
          %s1147 = int_to_ptr.vmem [resolvable:$true] %s1146
          %1149 = dma.vmem_to_hbm [thread:$0]  %s1147, 128, %s1144, %s1132
        $region80: #{tpu_custom_call.1} parent=67 // pred_fallthru
          _
      $region68: #{tpu_custom_call.1} parent=5 // pred_fallthru
        _
      %p1150 = scmp.le.s32.totalorder 2, %s21
      // Predicated region
      $region81: #{tpu_custom_call.1} parent=5 // pred_check
        %p1151 = pneg %p1150
      $region82: #{tpu_custom_call.1} parent=5 // pred_check_branch
        %1153 = sbr.rel (%p1151) target = $region84
      $region83: #{tpu_custom_call.1} parent=5 // pred_region
        %s1154 = ssub.s32 %s21, 2
        // Predicated region
        $region85: #{tpu_custom_call.1} parent=83 // pred_check
          %p1155 = pneg %p380
        $region86: #{tpu_custom_call.1} parent=83 // pred_check_branch
          %1157 = sbr.rel (%p1155) target = $region88
        $region87: #{tpu_custom_call.1} parent=83 // pred_region
          %s1158 = sand.u32 %s365, 1
          %s1159 = scalar_lea.sflag [#allocation4], %s1158
          %s1160 = sand.u32 %s365, 1
          %s1161 = smul.addr %s1160, 8
          %s1162 = scalar_lea.vmem [#allocation3], %s1161
          %1163 = dma.done %s1159, 128
        $region88: #{tpu_custom_call.1} parent=83 // pred_fallthru
          _
      $region84: #{tpu_custom_call.1} parent=5 // pred_fallthru
        _
    $region6: #{tpu_custom_call.1} parent=1 // loop_footer
      %s25 = sadd.s32 1, %s21
    $region7: #{tpu_custom_call.1} parent=1 // loop_footer_branch
      %20 = sbr.rel target = $region3
    $region8: #{tpu_custom_call.1} parent=1 // loop_exit
      _
    %1164 = vsyncpa [#allocation4], 1
    %s1165 = scalar_lea.sflag [#allocation4], 1
    %1166 = vsyncpa %s1165, 1

</llo_original>
